<compile_context>
chip_gen: v5e
topology: v5e:2x2
jax: 0.10.0
libtpu: 0.0.40
codegen_flags: <defaults>
</compile_context>

<pallas_src>
import functools

import jax
import jax.numpy as jnp
from jax.experimental import pallas as pl
from jax.experimental.pallas import tpu as pltpu


def _rmsnorm_kernel(x_ref, w_ref, o_ref, *, eps: float):
    # x_ref: (row_tile, d_model), w_ref: (1, d_model), o_ref: (row_tile, d_model)
    x = x_ref[...].astype(jnp.float32)
    w = w_ref[...].astype(jnp.float32)            # (1, d_model) broadcasts over rows
    ms = jnp.mean(x * x, axis=-1, keepdims=True)  # (row_tile, 1)
    inv = jax.lax.rsqrt(ms + eps)
    o_ref[...] = (x * inv * w).astype(o_ref.dtype)


def _sublane(dtype) -> int:
    """Sublane packing granularity for the row axis (8 f32, 16 bf16, 32 int8/fp8)."""
    itemsize = int(jnp.dtype(dtype).itemsize)
    return max(8, 32 // max(itemsize, 1))


def _pick_row_tile(rows: int, d_model: int, dtype) -> tuple[int, int]:
    """Pick (row_tile, vmem_limit_bytes) from a VMEM budget.

    BlockSpec double-buffers each operand, so the x/out tiles cost
    2*(in tile) + 2*(out tile) = 4 * tile_bytes of VMEM.
    """
    sub = _sublane(dtype)
    itemsize = int(jnp.dtype(dtype).itemsize)
    bytes_per_row = d_model * itemsize

    try:
        phys_vmem = int(pltpu.get_tpu_info().vmem_capacity_bytes)
    except Exception:
        phys_vmem = 64 * 1024 * 1024  # conservative: v7x per-TC VMEM

    # Budget for the 4 double-buffered x/out tiles: half of physical VMEM,
    # capped at 64 MiB (=> <=32 MiB of tiles on v7x, <=64 MiB on v5e/v6e).
    tiles_budget = max(8 * 1024 * 1024, min(phys_vmem // 2, 64 * 1024 * 1024))
    max_tile_bytes = tiles_budget // 4

    rows_cap = max(sub, (max_tile_bytes // max(bytes_per_row, 1)) // sub * sub)
    rows_needed = pl.cdiv(rows, sub) * sub          # smallest legal padded extent
    row_tile = min(rows_cap, rows_needed)

    tile_bytes = row_tile * bytes_per_row
    weight_bytes = 2 * d_model * 4                  # double-buffered weight, f32 upper bound
    vmem_limit = 4 * tile_bytes + weight_bytes + 4 * 1024 * 1024  # + headroom
    vmem_limit = max(vmem_limit, 16 * 1024 * 1024)
    vmem_limit = min(vmem_limit, max(phys_vmem - 8 * 1024 * 1024, 16 * 1024 * 1024))
    return int(row_tile), int(vmem_limit)


def rmsnorm(x: jax.Array, weight: jax.Array, eps: float = 1e-5,
            row_tile: int | None = None) -> jax.Array:
    """RMSNorm over the last axis of x, scaled by weight (shape (d_model,))."""
    orig_shape = x.shape
    d_model = orig_shape[-1]
    rows = 1
    for s in orig_shape[:-1]:
        rows *= s

    x2d = x.reshape(rows, d_model)
    w2d = weight.reshape(1, d_model)

    auto_tile, vmem_limit = _pick_row_tile(rows, d_model, x.dtype)
    if row_tile is None:
        row_tile = auto_tile
    else:
        sub = _sublane(x.dtype)
        row_tile = max(sub, (int(row_tile) // sub) * sub)

    grid0 = pl.cdiv(rows, row_tile)
    rows_padded = grid0 * row_tile
    if rows_padded != rows:
        # Zero-pad the row axis; padded rows are independent and finite
        # (rsqrt(0 + eps)), and are sliced off below.
        x2d = jnp.pad(x2d, ((0, rows_padded - rows), (0, 0)))

    out = pl.pallas_call(
        functools.partial(_rmsnorm_kernel, eps=float(eps)),
        out_shape=jax.ShapeDtypeStruct((rows_padded, d_model), x.dtype),
        grid_spec=pltpu.PrefetchScalarGridSpec(
            num_scalar_prefetch=0,
            grid=(grid0,),
            in_specs=[
                pl.BlockSpec((row_tile, d_model), lambda i: (i, 0)),
                pl.BlockSpec((1, d_model), lambda i: (0, 0)),  # constant: no re-DMA
            ],
            out_specs=pl.BlockSpec((row_tile, d_model), lambda i: (i, 0)),
        ),
        compiler_params=pltpu.CompilerParams(
            dimension_semantics=("parallel",),   # rows split across TCs on v7x
            vmem_limit_bytes=vmem_limit,
        ),
    )(x2d, w2d)

    if rows_padded != rows:
        out = out[:rows]
    return out.reshape(orig_shape)


if __name__ == "__main__":
    key = jax.random.PRNGKey(0)
    batch, seq, d_model = 2, 8, 32
    x = jax.random.normal(key, (batch, seq, d_model), dtype=jnp.float32)

    # Deterministic parameter init: weight = ones(d_model) (matches nn.Parameter(torch.ones)).
    weight = jnp.ones((d_model,), dtype=jnp.float32)
    eps = 1e-5

    out = rmsnorm(x, weight, eps)
    jax.block_until_ready(out)

    # Reference check in plain JAX (same math as the torch forward).
    ref = x * jax.lax.rsqrt(jnp.mean(x * x, axis=-1, keepdims=True) + eps) * weight
    assert out.shape == x.shape
    assert jnp.allclose(out, ref, atol=1e-5, rtol=1e-5), "mismatch vs reference"

    # Exercise the cdiv + padding path (rows not divisible by the forced tile).
    x_odd = jax.random.normal(jax.random.PRNGKey(1), (3, 7, d_model), dtype=jnp.float32)
    out_odd = rmsnorm(x_odd, weight, eps, row_tile=16)
    jax.block_until_ready(out_odd)
    ref_odd = x_odd * jax.lax.rsqrt(jnp.mean(x_odd * x_odd, axis=-1, keepdims=True) + eps) * weight
    assert jnp.allclose(out_odd, ref_odd, atol=1e-5, rtol=1e-5), "mismatch vs reference (padded path)"

    print("KERNEL_OK")
</pallas_src>

<mosaic_0001>
module attributes {stable_mosaic.version = 11 : i64} {
  func.func @_rmsnorm_kernel(%arg0: i32, %arg1: memref<16x32xf32, #tpu.memory_space<vmem>>, %arg2: memref<1x32xf32, #tpu.memory_space<vmem>>, %arg3: memref<16x32xf32, #tpu.memory_space<vmem>>) attributes {dimension_semantics = [#tpu.dimension_semantics<parallel>], iteration_bounds = array<i64: 1>, scalar_prefetch = 0 : i64, scratch_operands = 0 : i64, tpu.core_type = #tpu.core_type<tc>, window_params = [{transform_indices = @transform_0, window_bounds = array<i64: 16, 32>}, {pipeline_mode = #tpu.pipeline_mode<synchronous>, transform_indices = @transform_1, window_bounds = array<i64: 1, 32>}, {transform_indices = @transform_2, window_bounds = array<i64: 16, 32>}]} {
    %c0 = arith.constant 0 : index
    %c0_0 = arith.constant 0 : index
    %0 = vector.load %arg1[%c0, %c0_0] : memref<16x32xf32, #tpu.memory_space<vmem>>, vector<16x32xf32>
    %c0_1 = arith.constant 0 : index
    %c0_2 = arith.constant 0 : index
    %1 = vector.load %arg2[%c0_1, %c0_2] : memref<1x32xf32, #tpu.memory_space<vmem>>, vector<1x32xf32>
    %2 = arith.mulf %0, %0 : vector<16x32xf32>
    %cst = arith.constant dense<0.000000e+00> : vector<16xf32>
    %3 = vector.multi_reduction <add>, %2, %cst [1] : vector<16x32xf32> to vector<16xf32>
    %4 = vector.shape_cast %3 : vector<16xf32> to vector<16x1xf32>
    %cst_3 = arith.constant 3.200000e+01 : f32
    %5 = vector.broadcast %cst_3 : f32 to vector<16x1xf32>
    %6 = arith.divf %4, %5 : vector<16x1xf32>
    %cst_4 = arith.constant 9.99999974E-6 : f32
    %7 = vector.broadcast %cst_4 : f32 to vector<16x1xf32>
    %8 = arith.addf %6, %7 : vector<16x1xf32>
    %9 = math.rsqrt %8 : vector<16x1xf32>
    %10 = vector.broadcast %9 : vector<16x1xf32> to vector<16x32xf32>
    %11 = arith.mulf %0, %10 : vector<16x32xf32>
    %12 = vector.broadcast %1 : vector<1x32xf32> to vector<16x32xf32>
    %13 = arith.mulf %11, %12 : vector<16x32xf32>
    %c0_5 = arith.constant 0 : index
    %c0_6 = arith.constant 0 : index
    %14 = vector.load %arg3[%c0_5, %c0_6] : memref<16x32xf32, #tpu.memory_space<vmem>>, vector<16x32xf32>
    tpu.vector_store %arg3[%c0_5, %c0_6], %13 {strides = array<i32>} : memref<16x32xf32, #tpu.memory_space<vmem>>, vector<16x32xf32>,
    return
  }
  func.func @transform_0(%arg0: i32) -> (i32, i32) {
    %c0_i32 = arith.constant 0 : i32
    %c0_i32_0 = arith.constant 0 : i32
    return %arg0, %c0_i32 : i32, i32
  }
  func.func @transform_1(%arg0: i32) -> (i32, i32) {
    %c0_i32 = arith.constant 0 : i32
    %c0_i32_0 = arith.constant 0 : i32
    %c0_i32_1 = arith.constant 0 : i32
    return %c0_i32, %c0_i32_0 : i32, i32
  }
  func.func @transform_2(%arg0: i32) -> (i32, i32) {
    %c0_i32 = arith.constant 0 : i32
    %c0_i32_0 = arith.constant 0 : i32
    return %arg0, %c0_i32 : i32, i32
  }
}

</mosaic_0001>

<llo_original>
// kernel: tpu_custom_call.1
$region0: #{tpu_custom_call.1}
  #allocation0 [shape = 'u32[]', space=smem, size = 0x4, offset = 0x4, fixed_abs, tag = 'smem constant byte address 0x4 - core index']
  #allocation1 [shape = 'u32[72,128]{1,0:T(1,128)}', space=vmem, size = 0x9000, scoped, tag = 'internal scratch']
  %s0 = inlined_call_operand.hbm [shape: f32[16,32], index: 0, kind: input, shape index: {}]
  %s1 = inlined_call_operand.hbm [shape: f32[1,32], index: 1, kind: input, shape index: {}]
  %s2 = inlined_call_operand.hbm [shape: f32[16,32], index: 2, kind: output, shape index: {}]
  %s3 = sld [smem:[#allocation0]]
  $region26: #{tpu_custom_call.1} parent=0
    _
  %s5 = ssub.s32 1, %s3
  %s6 = scalar_select 0, %s5, %s3
  $region1: #{tpu_custom_call.1} parent=0
    #allocation2 [shape = 'u8[8192]{0}', space=vmem, size = 0x2000, scoped, tag = 'input window, operand 0, single buffered']
    #allocation3 [shape = 's32[1]{0}', space=sflag, size = 0x4, scoped, tag = 'scoped memory for tpu_custom_call.1']
    #allocation4 [shape = 's32[1]{0}', space=sflag, size = 0x4, scoped, tag = 'scoped memory for tpu_custom_call.1']
    #allocation5 [shape = 'u8[512]{0}', space=vmem, size = 0x400, scoped, tag = 'input window, operand 1, single buffered']
    #allocation6 [shape = 's32[1]{0}', space=sflag, size = 0x4, scoped, tag = 'scoped memory for tpu_custom_call.1']
    #allocation7 [shape = 'u8[8192]{0}', space=vmem, size = 0x2000, scoped, tag = 'output window, operand 0, single buffered']
    %7 = vsyncpa [#allocation3], 0
    %8 = vsyncpa [#allocation6], 0
    %9 = vsyncpa [#allocation4], 0
    // Predicated region
    $region2: #{tpu_custom_call.1} parent=1 // pred_check
      _
    $region3: #{tpu_custom_call.1} parent=1 // pred_check_branch
      %11 = sbr.rel (0) target = $region5
    $region4: #{tpu_custom_call.1} parent=1 // pred_region
      %13 = vsyncadd [#allocation3], 0
      %s14 = sshll.u32 %s0, 4
      %s15 = int_to_ptr.hbm [resolvable:$true] %s14
      %s16 = sshll.u32 [#allocation2], 4
      %s17 = int_to_ptr.vmem [resolvable:$true] %s16
      %22 = dma.hbm_to_vmem [thread:$0]  %s15, 256, %s17, [#allocation3], 128, 128, 8
    $region5: #{tpu_custom_call.1} parent=1 // pred_fallthru
      _
    // Predicated region
    $region6: #{tpu_custom_call.1} parent=1 // pred_check
      _
    $region7: #{tpu_custom_call.1} parent=1 // pred_check_branch
      %24 = sbr.rel (0) target = $region9
    $region8: #{tpu_custom_call.1} parent=1 // pred_region
      %26 = vsyncadd [#allocation6], 0
      %s28 = sshll.u32 %s1, 4
      %s29 = int_to_ptr.hbm [resolvable:$true] %s28
      %s30 = sshll.u32 [#allocation5], 4
      %s31 = int_to_ptr.vmem [resolvable:$true] %s30
      %33 = dma.hbm_to_vmem [thread:$0]  %s29, 16, %s31, [#allocation6]
    $region9: #{tpu_custom_call.1} parent=1 // pred_fallthru
      _
    // Predicated region
    $region10: #{tpu_custom_call.1} parent=1 // pred_check
      _
    $region11: #{tpu_custom_call.1} parent=1 // pred_check_branch
      %35 = sbr.rel (0) target = $region13
    $region12: #{tpu_custom_call.1} parent=1 // pred_region
      %37 = dma.done [#allocation3], 256
    $region13: #{tpu_custom_call.1} parent=1 // pred_fallthru
      _
    // Predicated region
    $region14: #{tpu_custom_call.1} parent=1 // pred_check
      _
    $region15: #{tpu_custom_call.1} parent=1 // pred_check_branch
      %39 = sbr.rel (0) target = $region17
    $region16: #{tpu_custom_call.1} parent=1 // pred_region
      %41 = dma.done [#allocation6], 16
    $region17: #{tpu_custom_call.1} parent=1 // pred_fallthru
      _
    %v42 = vld [vmem:[#allocation2] sm:$0xff]
    %v43 = vld [vmem:[#allocation2 + $0x8] sm:$0xff]
    %v44 = vld [vmem:[#allocation5] sm:$0x1]
    %v45 = vmul.f32 %v42, %v42
    %v46 = vmul.f32 %v43, %v43
    %vm47 = vcmask 261120
    %v48 = vsel %vm47, %v45, 0.0
    %49 = vadd.xlane.f32.xlu0 %v48
    %v50 = vpop.xlane.xlu0 %49
    %v51 = vsel %vm47, %v46, 0.0
    %52 = vadd.xlane.f32.xlu0 %v51
    %v53 = vpop.xlane.xlu0 %52
    %v54 = vrcp.pop 32.0
    %v55 = vmul.f32 32.0, %v54
    %v56 = vsub.f32 1.0, %v55
    %v57 = vmul.f32 %v54, %v56
    %v58 = vadd.f32 %v54, %v57
    %vm59 = vweird.f32 %v54
    %v60 = vsel %vm59, %v54, %v58
    %v61 = vmul.f32 %v50, %v60
    %v62 = vmul.f32 %v53, %v60
    %v63 = vadd.f32 %v61, 1e-05
    %v64 = vadd.f32 %v62, 1e-05
    %v65 = vrsqrt.pop %v63
    %v66 = vmul.f32 %v65, %v63
    %v67 = vmul.f32 %v66, %v65
    %v68 = vmul.f32 0.5, %v67
    %v69 = vsub.f32 1.5, %v68
    %v70 = vmul.f32 %v65, %v69
    %vm71 = vweird.f32 %v63
    %vm72 = vweird.f32 %v65
    %vm73 = vmor %vm71, %vm72
    %v74 = vsel %vm73, %v65, %v70
    %v75 = vrsqrt.pop %v64
    %v76 = vmul.f32 %v75, %v64
    %v77 = vmul.f32 %v76, %v75
    %v78 = vmul.f32 0.5, %v77
    %v79 = vsub.f32 1.5, %v78
    %v80 = vmul.f32 %v75, %v79
    %vm81 = vweird.f32 %v64
    %vm82 = vweird.f32 %v75
    %vm83 = vmor %vm81, %vm82
    %v84 = vsel %vm83, %v75, %v80
    %v85 = vmul.f32 %v42, %v74
    %v86 = vmul.f32 %v43, %v84
    %v88 = vperm.slane %v44, 0
    %v90 = vmul.f32 %v85, %v88
    %v91 = vmul.f32 %v86, %v88
    %92 = vst.msk [vmem:[#allocation7] sm:$0xff] %vm47, %v90
    %93 = vst.msk [vmem:[#allocation7 + $0x8] sm:$0xff] %vm47, %v91
    // Predicated region
    $region18: #{tpu_custom_call.1} parent=1 // pred_check
      _
    $region19: #{tpu_custom_call.1} parent=1 // pred_check_branch
      %95 = sbr.rel (0) target = $region21
    $region20: #{tpu_custom_call.1} parent=1 // pred_region
      %97 = vsyncadd [#allocation4], 0
      %s98 = sshll.u32 [#allocation7], 4
      %s99 = int_to_ptr.vmem [resolvable:$true] %s98
      %s100 = sshll.u32 %s2, 4
      %s101 = int_to_ptr.hbm [resolvable:$true] %s100
      %106 = dma.vmem_to_hbm [thread:$0]  %s99, 256, %s101, [#allocation4], 128, 128, 8
    $region21: #{tpu_custom_call.1} parent=1 // pred_fallthru
      _
    // Predicated region
    $region22: #{tpu_custom_call.1} parent=1 // pred_check
      _
    $region23: #{tpu_custom_call.1} parent=1 // pred_check_branch
      %108 = sbr.rel (0) target = $region25
    $region24: #{tpu_custom_call.1} parent=1 // pred_region
      %110 = dma.done [#allocation4], 256
    $region25: #{tpu_custom_call.1} parent=1 // pred_fallthru
      _
    %111 = vsyncpa [#allocation3], 1
    %112 = vsyncpa [#allocation6], 1
    %113 = vsyncpa [#allocation4], 1

</llo_original>
